<compile_context>
chip_gen: v7x
topology: tpu7x:2x2x1
jax: 0.10.0
libtpu: 0.0.40
codegen_flags: <defaults>
</compile_context>

<pallas_src>
import jax
import jax.numpy as jnp
from jax.experimental import pallas as pl
from jax.experimental.pallas import tpu as pltpu

INPUT_SIZE = 512
HIDDEN_SIZE = 16
NUM_CLASSES = 10
LANE = 128        # lane-dense padded output width (unmasked full-lane stores)
MAX_TB = 2048     # default max rows per batch tile (~10 MiB double-buffered @ f32)


def _round_up(n, m):
    return ((n + m - 1) // m) * m


def _cdiv(a, b):
    return -(-a // b)


def _choose_tiling(b, tb):
    """Pick (tile_rows, num_tiles) so that pad waste is <8 rows per tile and,
    when there is enough work, the grid has an even number of >=2 steps so a
    'parallel' axis feeds both v7x TensorCores."""
    if tb is not None:
        # Validate user tile: >=8, multiple of 8, no larger than the padded batch.
        tb = max(8, _round_up(int(tb), 8))
        tb = min(tb, _round_up(b, 8))
        num_tiles = _cdiv(b, tb)
        return tb, num_tiles

    num_tiles = _cdiv(b, MAX_TB)
    if num_tiles < 2 and b >= 16:
        num_tiles = 2                      # use both TCs on v7x (no-op v5e/v6e)
    if num_tiles > 1 and num_tiles % 2:
        num_tiles += 1                     # even step count pairs across 2 TCs
    tb = _round_up(_cdiv(b, num_tiles), 8)
    return tb, num_tiles


def mlp_kernel(x_ref, w1_ref, b1_ref, w2_ref, b2_ref, o_ref):
    # Module's x.float() happens here: the VMEM tile is upcast on the VPU so
    # int8/int32/bf16 inputs stream HBM at native width (kernel is HBM-bound,
    # the cast is hidden). Both matmuls are f32 with f32 accumulation.
    x = x_ref[...].astype(jnp.float32)
    h = jnp.dot(x, w1_ref[...], preferred_element_type=jnp.float32) + b1_ref[...]
    h = jnp.maximum(h, 0.0)
    y = jnp.dot(h, w2_ref[...], preferred_element_type=jnp.float32) + b2_ref[...]
    o_ref[...] = y.astype(o_ref.dtype)


def mlp_forward(x, w1, b1, w2, b2, *, tb=None, out_dtype=jnp.float32):
    """Forward pass of the MLP.

    x:  leading batch dim; trailing dims must multiply to INPUT_SIZE. Any
        int/float dtype (the x.float() upcast is done inside the kernel).
    w1: (512, 16), b1: (16,), w2: (16, 10), b2: (10,)
        stored as (in, out): y = x @ W + b  ==  PyTorch  x @ W_pt.T + b.
    """
    b = x.shape[0]
    if b == 0:
        return jnp.zeros((0, NUM_CLASSES), out_dtype)
    x = x.reshape(b, -1)
    if x.shape[1] != INPUT_SIZE:
        raise ValueError(f"expected {INPUT_SIZE} features, got {x.shape[1]}")

    # Canonicalize params to f32 (tiny, one-time) so the kernel math matches
    # the PyTorch f32 reference exactly.
    w1 = jnp.asarray(w1, jnp.float32).reshape(INPUT_SIZE, HIDDEN_SIZE)
    b1 = jnp.asarray(b1, jnp.float32).reshape(1, HIDDEN_SIZE)
    w2 = jnp.asarray(w2, jnp.float32).reshape(HIDDEN_SIZE, NUM_CLASSES)
    b2 = jnp.asarray(b2, jnp.float32).reshape(1, NUM_CLASSES)

    # Lane-dense output head: pad 10 -> 128 columns with zeros.
    w2p = jnp.zeros((HIDDEN_SIZE, LANE), jnp.float32).at[:, :NUM_CLASSES].set(w2)
    b2p = jnp.zeros((1, LANE), jnp.float32).at[:, :NUM_CLASSES].set(b2)

    tb, num_tiles = _choose_tiling(b, tb)
    b_pad = tb * num_tiles
    if b_pad != b:
        x = jnp.pad(x, ((0, b_pad - b), (0, 0)))

    out = pl.pallas_call(
        mlp_kernel,
        out_shape=jax.ShapeDtypeStruct((b_pad, LANE), out_dtype),
        grid=(num_tiles,),
        in_specs=[
            # x streamed per batch tile (double-buffered by the pipeline).
            pl.BlockSpec((tb, INPUT_SIZE), lambda i: (i, 0)),
            # Weights/biases: full-array blocks with constant index ->
            # fetched once, VMEM-resident across the whole grid (<70 KiB).
            pl.BlockSpec((INPUT_SIZE, HIDDEN_SIZE), lambda i: (0, 0)),
            pl.BlockSpec((1, HIDDEN_SIZE), lambda i: (0, 0)),
            pl.BlockSpec((HIDDEN_SIZE, LANE), lambda i: (0, 0)),
            pl.BlockSpec((1, LANE), lambda i: (0, 0)),
        ],
        out_specs=pl.BlockSpec((tb, LANE), lambda i: (i, 0)),
        compiler_params=pltpu.CompilerParams(
            dimension_semantics=("parallel",),
            # Modest request: ~10 MiB actual footprint at tb=2048; stays well
            # under v7x's 64 MiB physical VMEM while bumping v5e's 16 MiB default.
            vmem_limit_bytes=32 * 1024 * 1024,
        ),
    )(x, w1, b1, w2p, b2p)

    # Drop batch padding (padded rows hold ReLU(b1)@w2+b2 garbage) and the
    # zero-padded output lanes.
    return out[:b, :NUM_CLASSES]


def make_params(key):
    """Deterministic synthetic params (PyTorch-Linear-style uniform init)."""
    k1, k2, k3, k4 = jax.random.split(key, 4)
    bound1 = 1.0 / (INPUT_SIZE ** 0.5)
    bound2 = 1.0 / (HIDDEN_SIZE ** 0.5)
    w1 = jax.random.uniform(k1, (INPUT_SIZE, HIDDEN_SIZE), jnp.float32, -bound1, bound1)
    b1 = jax.random.uniform(k2, (HIDDEN_SIZE,), jnp.float32, -bound1, bound1)
    w2 = jax.random.uniform(k3, (HIDDEN_SIZE, NUM_CLASSES), jnp.float32, -bound2, bound2)
    b2 = jax.random.uniform(k4, (NUM_CLASSES,), jnp.float32, -bound2, bound2)
    return w1, b1, w2, b2


def _ref(x, w1, b1, w2, b2):
    xf = x.reshape(x.shape[0], -1).astype(jnp.float32)
    return jnp.maximum(xf @ w1 + b1.reshape(1, -1), 0.0) @ w2 + b2.reshape(1, -1)


if __name__ == "__main__":
    key = jax.random.PRNGKey(0)
    kx, ki, kb, kp = jax.random.split(key, 4)
    w1, b1, w2, b2 = make_params(kp)

    # 1) Small float batch (module reshapes to (B, 512)).
    x = jax.random.normal(kx, (2, INPUT_SIZE), jnp.float32)
    out = mlp_forward(x, w1, b1, w2, b2)
    jax.block_until_ready(out)
    assert out.shape == (2, NUM_CLASSES)
    assert jnp.allclose(out, _ref(x, w1, b1, w2, b2), atol=1e-5, rtol=1e-5)

    # 2) Integer input: x.float() is performed inside the kernel.
    xi = jax.random.randint(ki, (2, INPUT_SIZE), -5, 5, jnp.int32)
    out_i = mlp_forward(xi, w1, b1, w2, b2)
    jax.block_until_ready(out_i)
    assert jnp.allclose(out_i, _ref(xi, w1, b1, w2, b2), atol=1e-5, rtol=1e-5)

    # 3) Batch that exercises multi-tile + padding path (b=40 -> 2 tiles of 24).
    xb = jax.random.normal(kb, (40, INPUT_SIZE), jnp.float32)
    out_b = mlp_forward(xb, w1, b1, w2, b2)
    jax.block_until_ready(out_b)
    assert out_b.shape == (40, NUM_CLASSES)
    assert jnp.allclose(out_b, _ref(xb, w1, b1, w2, b2), atol=1e-5, rtol=1e-5)

    print("KERNEL_OK")
</pallas_src>

<mosaic_0001>
module attributes {stable_mosaic.version = 11 : i64} {
  func.func @mlp_kernel(%arg0: i32, %arg1: memref<8x512xf32, #tpu.memory_space<vmem>>, %arg2: memref<512x16xf32, #tpu.memory_space<vmem>>, %arg3: memref<1x16xf32, #tpu.memory_space<vmem>>, %arg4: memref<16x128xf32, #tpu.memory_space<vmem>>, %arg5: memref<1x128xf32, #tpu.memory_space<vmem>>, %arg6: memref<8x128xf32, #tpu.memory_space<vmem>>) attributes {dimension_semantics = [#tpu.dimension_semantics<parallel>], iteration_bounds = array<i64: 1>, scalar_prefetch = 0 : i64, scratch_operands = 0 : i64, tpu.core_type = #tpu.core_type<tc>, window_params = [{transform_indices = @transform_0, window_bounds = array<i64: 8, 512>}, {pipeline_mode = #tpu.pipeline_mode<synchronous>, transform_indices = @transform_1, window_bounds = array<i64: 512, 16>}, {pipeline_mode = #tpu.pipeline_mode<synchronous>, transform_indices = @transform_2, window_bounds = array<i64: 1, 16>}, {pipeline_mode = #tpu.pipeline_mode<synchronous>, transform_indices = @transform_3, window_bounds = array<i64: 16, 128>}, {pipeline_mode = #tpu.pipeline_mode<synchronous>, transform_indices = @transform_4, window_bounds = array<i64: 1, 128>}, {transform_indices = @transform_5, window_bounds = array<i64: 8, 128>}]} {
    %c0 = arith.constant 0 : index
    %c0_0 = arith.constant 0 : index
    %0 = vector.load %arg1[%c0, %c0_0] : memref<8x512xf32, #tpu.memory_space<vmem>>, vector<8x512xf32>
    %c0_1 = arith.constant 0 : index
    %c0_2 = arith.constant 0 : index
    %1 = vector.load %arg2[%c0_1, %c0_2] : memref<512x16xf32, #tpu.memory_space<vmem>>, vector<512x16xf32>
    %cst = arith.constant dense<0.000000e+00> : vector<8x16xf32>
    %2 = tpu.matmul %0, %1, %cst {dimension_numbers = #tpu.dot_dimension_numbers<[1], [0], [0], [1], [0, 0, 1, 1], [], []>} : vector<8x512xf32>, vector<512x16xf32>, vector<8x16xf32> -> vector<8x16xf32>
    %c0_3 = arith.constant 0 : index
    %c0_4 = arith.constant 0 : index
    %3 = vector.load %arg3[%c0_3, %c0_4] : memref<1x16xf32, #tpu.memory_space<vmem>>, vector<1x16xf32>
    %4 = vector.broadcast %3 : vector<1x16xf32> to vector<8x16xf32>
    %5 = arith.addf %2, %4 : vector<8x16xf32>
    %cst_5 = arith.constant 0.000000e+00 : f32
    %6 = vector.broadcast %cst_5 : f32 to vector<8x16xf32>
    %7 = arith.maximumf %5, %6 : vector<8x16xf32>
    %c0_6 = arith.constant 0 : index
    %c0_7 = arith.constant 0 : index
    %8 = vector.load %arg4[%c0_6, %c0_7] : memref<16x128xf32, #tpu.memory_space<vmem>>, vector<16x128xf32>
    %cst_8 = arith.constant dense<0.000000e+00> : vector<8x128xf32>
    %9 = tpu.matmul %7, %8, %cst_8 {dimension_numbers = #tpu.dot_dimension_numbers<[1], [0], [0], [1], [0, 0, 1, 1], [], []>} : vector<8x16xf32>, vector<16x128xf32>, vector<8x128xf32> -> vector<8x128xf32>
    %c0_9 = arith.constant 0 : index
    %c0_10 = arith.constant 0 : index
    %10 = vector.load %arg5[%c0_9, %c0_10] : memref<1x128xf32, #tpu.memory_space<vmem>>, vector<1x128xf32>
    %11 = vector.broadcast %10 : vector<1x128xf32> to vector<8x128xf32>
    %12 = arith.addf %9, %11 : vector<8x128xf32>
    %c0_11 = arith.constant 0 : index
    %c0_12 = arith.constant 0 : index
    %13 = vector.load %arg6[%c0_11, %c0_12] : memref<8x128xf32, #tpu.memory_space<vmem>>, vector<8x128xf32>
    tpu.vector_store %arg6[%c0_11, %c0_12], %12 {strides = array<i32>} : memref<8x128xf32, #tpu.memory_space<vmem>>, vector<8x128xf32>,
    return
  }
  func.func @transform_0(%arg0: i32) -> (i32, i32) {
    %c0_i32 = arith.constant 0 : i32
    %c0_i32_0 = arith.constant 0 : i32
    return %arg0, %c0_i32 : i32, i32
  }
  func.func @transform_1(%arg0: i32) -> (i32, i32) {
    %c0_i32 = arith.constant 0 : i32
    %c0_i32_0 = arith.constant 0 : i32
    %c0_i32_1 = arith.constant 0 : i32
    return %c0_i32, %c0_i32_0 : i32, i32
  }
  func.func @transform_2(%arg0: i32) -> (i32, i32) {
    %c0_i32 = arith.constant 0 : i32
    %c0_i32_0 = arith.constant 0 : i32
    %c0_i32_1 = arith.constant 0 : i32
    return %c0_i32, %c0_i32_0 : i32, i32
  }
  func.func @transform_3(%arg0: i32) -> (i32, i32) {
    %c0_i32 = arith.constant 0 : i32
    %c0_i32_0 = arith.constant 0 : i32
    %c0_i32_1 = arith.constant 0 : i32
    return %c0_i32, %c0_i32_0 : i32, i32
  }
  func.func @transform_4(%arg0: i32) -> (i32, i32) {
    %c0_i32 = arith.constant 0 : i32
    %c0_i32_0 = arith.constant 0 : i32
    %c0_i32_1 = arith.constant 0 : i32
    return %c0_i32, %c0_i32_0 : i32, i32
  }
  func.func @transform_5(%arg0: i32) -> (i32, i32) {
    %c0_i32 = arith.constant 0 : i32
    %c0_i32_0 = arith.constant 0 : i32
    return %arg0, %c0_i32 : i32, i32
  }
}

</mosaic_0001>

<llo_original>
// kernel: tpu_custom_call.1
$region0: #{tpu_custom_call.1}
  #allocation0 [shape = 'u32[]', space=smem, size = 0x4, offset = 0x4, fixed_abs, tag = 'smem constant byte address 0x4 - core index']
  #allocation1 [shape = 'u32[144,128]{1,0:T(1,128)}', space=vmem, size = 0x12000, scoped, tag = 'internal scratch']
  %s0 = inlined_call_operand.vmem [shape: f32[8,512], index: 0, kind: input, shape index: {}]
  %s1 = inlined_call_operand.vmem [shape: f32[512,16], index: 1, kind: input, shape index: {}]
  %s2 = inlined_call_operand.vmem [shape: f32[1,16], index: 2, kind: input, shape index: {}]
  %s3 = inlined_call_operand.vmem [shape: f32[16,128], index: 3, kind: input, shape index: {}]
  %s4 = inlined_call_operand.vmem [shape: f32[1,128], index: 4, kind: input, shape index: {}]
  %s5 = inlined_call_operand.hbm [shape: f32[8,128], index: 5, kind: output, shape index: {}]
  %s6 = sld [smem:[#allocation0]]
  $region30: #{tpu_custom_call.1} parent=0
    _
  %s8 = ssub.s32 1, %s6
  %s9 = scalar_select 0, %s8, %s6
  $region1: #{tpu_custom_call.1} parent=0
    #allocation2 [shape = 'u8[4096]{0}', space=vmem, size = 0x1000, scoped, tag = 'output window, operand 0, single buffered']
    #allocation3 [shape = 's32[1]{0}', space=sflag, size = 0x4, scoped, tag = 'scoped memory for tpu_custom_call.1']
    %10 = vsyncpa [#allocation3], 0
    // Predicated region
    $region2: #{tpu_custom_call.1} parent=1 // pred_check
      _
    $region3: #{tpu_custom_call.1} parent=1 // pred_check_branch
      %12 = sbr.rel (0) target = $region5
    $region4: #{tpu_custom_call.1} parent=1 // pred_region
      _
    $region5: #{tpu_custom_call.1} parent=1 // pred_fallthru
      _
    // Predicated region
    $region6: #{tpu_custom_call.1} parent=1 // pred_check
      _
    $region7: #{tpu_custom_call.1} parent=1 // pred_check_branch
      %14 = sbr.rel (0) target = $region9
    $region8: #{tpu_custom_call.1} parent=1 // pred_region
      _
    $region9: #{tpu_custom_call.1} parent=1 // pred_fallthru
      _
    // Predicated region
    $region10: #{tpu_custom_call.1} parent=1 // pred_check
      _
    $region11: #{tpu_custom_call.1} parent=1 // pred_check_branch
      %16 = sbr.rel (0) target = $region13
    $region12: #{tpu_custom_call.1} parent=1 // pred_region
      _
    $region13: #{tpu_custom_call.1} parent=1 // pred_fallthru
      _
    // Predicated region
    $region14: #{tpu_custom_call.1} parent=1 // pred_check
      _
    $region15: #{tpu_custom_call.1} parent=1 // pred_check_branch
      %18 = sbr.rel (0) target = $region17
    $region16: #{tpu_custom_call.1} parent=1 // pred_region
      _
    $region17: #{tpu_custom_call.1} parent=1 // pred_fallthru
      _
    // Predicated region
    $region18: #{tpu_custom_call.1} parent=1 // pred_check
      _
    $region19: #{tpu_custom_call.1} parent=1 // pred_check_branch
      %20 = sbr.rel (0) target = $region21
    $region20: #{tpu_custom_call.1} parent=1 // pred_region
      _
    $region21: #{tpu_custom_call.1} parent=1 // pred_fallthru
      _
    %v21 = vld [vmem:[%s0] sm:$0xff]
    %v22 = vld [vmem:[%s0 + $0x8] sm:$0xff]
    %v23 = vld [vmem:[%s0 + $0x10] sm:$0xff]
    %v24 = vld [vmem:[%s0 + $0x18] sm:$0xff]
    %v25 = vld [vmem:[%s1] sm:$0xff]
    %v26 = vld [vmem:[%s1 + $0x8] sm:$0xff]
    %v27 = vld [vmem:[%s1 + $0x10] sm:$0xff]
    %v28 = vld [vmem:[%s1 + $0x18] sm:$0xff]
    %v29 = vld [vmem:[%s1 + $0x20] sm:$0xff]
    %v30 = vld [vmem:[%s1 + $0x28] sm:$0xff]
    %v31 = vld [vmem:[%s1 + $0x30] sm:$0xff]
    %v32 = vld [vmem:[%s1 + $0x38] sm:$0xff]
    %v33 = vld [vmem:[%s1 + $0x40] sm:$0xff]
    %v34 = vld [vmem:[%s1 + $0x48] sm:$0xff]
    %v35 = vld [vmem:[%s1 + $0x50] sm:$0xff]
    %v36 = vld [vmem:[%s1 + $0x58] sm:$0xff]
    %v37 = vld [vmem:[%s1 + $0x60] sm:$0xff]
    %v38 = vld [vmem:[%s1 + $0x68] sm:$0xff]
    %v39 = vld [vmem:[%s1 + $0x70] sm:$0xff]
    %v40 = vld [vmem:[%s1 + $0x78] sm:$0xff]
    %v41 = vld [vmem:[%s1 + $0x80] sm:$0xff]
    %v42 = vld [vmem:[%s1 + $0x88] sm:$0xff]
    %v43 = vld [vmem:[%s1 + $0x90] sm:$0xff]
    %v44 = vld [vmem:[%s1 + $0x98] sm:$0xff]
    %v45 = vld [vmem:[%s1 + $0xa0] sm:$0xff]
    %v46 = vld [vmem:[%s1 + $0xa8] sm:$0xff]
    %v47 = vld [vmem:[%s1 + $0xb0] sm:$0xff]
    %v48 = vld [vmem:[%s1 + $0xb8] sm:$0xff]
    %v49 = vld [vmem:[%s1 + $0xc0] sm:$0xff]
    %v50 = vld [vmem:[%s1 + $0xc8] sm:$0xff]
    %v51 = vld [vmem:[%s1 + $0xd0] sm:$0xff]
    %v52 = vld [vmem:[%s1 + $0xd8] sm:$0xff]
    %v53 = vld [vmem:[%s1 + $0xe0] sm:$0xff]
    %v54 = vld [vmem:[%s1 + $0xe8] sm:$0xff]
    %v55 = vld [vmem:[%s1 + $0xf0] sm:$0xff]
    %v56 = vld [vmem:[%s1 + $0xf8] sm:$0xff]
    %v57 = vld [vmem:[%s1 + $0x100] sm:$0xff]
    %v58 = vld [vmem:[%s1 + $0x108] sm:$0xff]
    %v59 = vld [vmem:[%s1 + $0x110] sm:$0xff]
    %v60 = vld [vmem:[%s1 + $0x118] sm:$0xff]
    %v61 = vld [vmem:[%s1 + $0x120] sm:$0xff]
    %v62 = vld [vmem:[%s1 + $0x128] sm:$0xff]
    %v63 = vld [vmem:[%s1 + $0x130] sm:$0xff]
    %v64 = vld [vmem:[%s1 + $0x138] sm:$0xff]
    %v65 = vld [vmem:[%s1 + $0x140] sm:$0xff]
    %v66 = vld [vmem:[%s1 + $0x148] sm:$0xff]
    %v67 = vld [vmem:[%s1 + $0x150] sm:$0xff]
    %v68 = vld [vmem:[%s1 + $0x158] sm:$0xff]
    %v69 = vld [vmem:[%s1 + $0x160] sm:$0xff]
    %v70 = vld [vmem:[%s1 + $0x168] sm:$0xff]
    %v71 = vld [vmem:[%s1 + $0x170] sm:$0xff]
    %v72 = vld [vmem:[%s1 + $0x178] sm:$0xff]
    %v73 = vld [vmem:[%s1 + $0x180] sm:$0xff]
    %v74 = vld [vmem:[%s1 + $0x188] sm:$0xff]
    %v75 = vld [vmem:[%s1 + $0x190] sm:$0xff]
    %v76 = vld [vmem:[%s1 + $0x198] sm:$0xff]
    %v77 = vld [vmem:[%s1 + $0x1a0] sm:$0xff]
    %v78 = vld [vmem:[%s1 + $0x1a8] sm:$0xff]
    %v79 = vld [vmem:[%s1 + $0x1b0] sm:$0xff]
    %v80 = vld [vmem:[%s1 + $0x1b8] sm:$0xff]
    %v81 = vld [vmem:[%s1 + $0x1c0] sm:$0xff]
    %v82 = vld [vmem:[%s1 + $0x1c8] sm:$0xff]
    %v83 = vld [vmem:[%s1 + $0x1d0] sm:$0xff]
    %v84 = vld [vmem:[%s1 + $0x1d8] sm:$0xff]
    %v85 = vld [vmem:[%s1 + $0x1e0] sm:$0xff]
    %v86 = vld [vmem:[%s1 + $0x1e8] sm:$0xff]
    %v87 = vld [vmem:[%s1 + $0x1f0] sm:$0xff]
    %v88 = vld [vmem:[%s1 + $0x1f8] sm:$0xff]
    %v89 = vld [vmem:[%s2] sm:$0x1]
    %v91 = vlaneseq
    %v92 = vshrl.u32 %v91, 7
    %v93 = vsub.s32 0, %v92
    %v94 = vrot.slane %v89, %v93
    %96 = vmatprep.subr.mxu0 0.0
    %97 = vmatpush1.msra.mxu0 %v25
    %98 = vmatprep.subr.mxu0 0.0
    %99 = vmatpush1.msra.mxu0 %v26
    %100 = vmatprep.subr.mxu0 0.0
    %101 = vmatpush1.msra.mxu0 %v27
    %102 = vmatprep.subr.mxu0 0.0
    %103 = vmatpush1.msra.mxu0 %v28
    %104 = vmatprep.subr.mxu0 0.0
    %105 = vmatpush1.msra.mxu0 %v29
    %106 = vmatprep.subr.mxu0 0.0
    %107 = vmatpush1.msra.mxu0 %v30
    %108 = vmatprep.subr.mxu0 0.0
    %109 = vmatpush1.msra.mxu0 %v31
    %110 = vmatprep.subr.mxu0 0.0
    %111 = vmatpush1.msra.mxu0 %v32
    %112 = vmatprep.subr.mxu0 0.0
    %113 = vmatpush1.msra.mxu0 %v33
    %114 = vmatprep.subr.mxu0 0.0
    %115 = vmatpush1.msra.mxu0 %v34
    %116 = vmatprep.subr.mxu0 0.0
    %117 = vmatpush1.msra.mxu0 %v35
    %118 = vmatprep.subr.mxu0 0.0
    %119 = vmatpush1.msra.mxu0 %v36
    %120 = vmatprep.subr.mxu0 0.0
    %121 = vmatpush1.msra.mxu0 %v37
    %122 = vmatprep.subr.mxu0 0.0
    %123 = vmatpush1.msra.mxu0 %v38
    %124 = vmatprep.subr.mxu0 0.0
    %125 = vmatpush1.msra.mxu0 %v39
    %126 = vmatprep.subr.mxu0 0.0
    %127 = vmatpush1.msra.mxu0 %v40
    %128 = vmatprep.subr.mxu0 0.0
    %129 = vmatpush1.msra.mxu0 %v41
    %130 = vmatprep.subr.mxu0 0.0
    %131 = vmatpush1.msra.mxu0 %v42
    %132 = vmatprep.subr.mxu0 0.0
    %133 = vmatpush1.msra.mxu0 %v43
    %134 = vmatprep.subr.mxu0 0.0
    %135 = vmatpush1.msra.mxu0 %v44
    %136 = vmatprep.subr.mxu0 0.0
    %137 = vmatpush1.msra.mxu0 %v45
    %138 = vmatprep.subr.mxu0 0.0
    %139 = vmatpush1.msra.mxu0 %v46
    %140 = vmatprep.subr.mxu0 0.0
    %141 = vmatpush1.msra.mxu0 %v47
    %142 = vmatprep.subr.mxu0 0.0
    %143 = vmatpush1.msra.mxu0 %v48
    %144 = vmatprep.subr.mxu0 0.0
    %145 = vmatpush1.msra.mxu0 %v49
    %146 = vmatprep.subr.mxu0 0.0
    %147 = vmatpush1.msra.mxu0 %v50
    %148 = vmatprep.subr.mxu0 0.0
    %149 = vmatpush1.msra.mxu0 %v51
    %150 = vmatprep.subr.mxu0 0.0
    %151 = vmatpush1.msra.mxu0 %v52
    %152 = vmatprep.subr.mxu0 0.0
    %153 = vmatpush1.msra.mxu0 %v53
    %154 = vmatprep.subr.mxu0 0.0
    %155 = vmatpush1.msra.mxu0 %v54
    %156 = vmatprep.subr.mxu0 0.0
    %157 = vmatpush1.msra.mxu0 %v55
    %158 = vmatprep.subr.mxu0 0.0
    %159 = vmatpush1.msra.mxu0 %v56
    %160 = vmatprep.mubr.f32.mxu0 %v22
    %161 = vmatmul.mubr.f32.gmra.mrb[0].mxu0 %v21
    %v162 = vpop.f32.mrb[0].mxu0
    %v163 = vadd.f32 %v94, %v162
    %v164 = vpop.f32.mrb[0].mxu0
    %165 = vdwg.mxu0
    %166 = vmatprep.subr.mxu0 0.0
    %167 = vmatpush1.msra.mxu0 %v57
    %168 = vmatprep.subr.mxu0 0.0
    %169 = vmatpush1.msra.mxu0 %v58
    %170 = vmatprep.subr.mxu0 0.0
    %171 = vmatpush1.msra.mxu0 %v59
    %172 = vmatprep.subr.mxu0 0.0
    %173 = vmatpush1.msra.mxu0 %v60
    %174 = vmatprep.subr.mxu0 0.0
    %175 = vmatpush1.msra.mxu0 %v61
    %176 = vmatprep.subr.mxu0 0.0
    %177 = vmatpush1.msra.mxu0 %v62
    %178 = vmatprep.subr.mxu0 0.0
    %179 = vmatpush1.msra.mxu0 %v63
    %180 = vmatprep.subr.mxu0 0.0
    %181 = vmatpush1.msra.mxu0 %v64
    %182 = vmatprep.subr.mxu0 0.0
    %183 = vmatpush1.msra.mxu0 %v65
    %184 = vmatprep.subr.mxu0 0.0
    %185 = vmatpush1.msra.mxu0 %v66
    %186 = vmatprep.subr.mxu0 0.0
    %187 = vmatpush1.msra.mxu0 %v67
    %188 = vmatprep.subr.mxu0 0.0
    %189 = vmatpush1.msra.mxu0 %v68
    %190 = vmatprep.subr.mxu0 0.0
    %191 = vmatpush1.msra.mxu0 %v69
    %192 = vmatprep.subr.mxu0 0.0
    %193 = vmatpush1.msra.mxu0 %v70
    %194 = vmatprep.subr.mxu0 0.0
    %195 = vmatpush1.msra.mxu0 %v71
    %196 = vmatprep.subr.mxu0 0.0
    %197 = vmatpush1.msra.mxu0 %v72
    %198 = vmatprep.subr.mxu0 0.0
    %199 = vmatpush1.msra.mxu0 %v73
    %200 = vmatprep.subr.mxu0 0.0
    %201 = vmatpush1.msra.mxu0 %v74
    %202 = vmatprep.subr.mxu0 0.0
    %203 = vmatpush1.msra.mxu0 %v75
    %204 = vmatprep.subr.mxu0 0.0
    %205 = vmatpush1.msra.mxu0 %v76
    %206 = vmatprep.subr.mxu0 0.0
    %207 = vmatpush1.msra.mxu0 %v77
    %208 = vmatprep.subr.mxu0 0.0
    %209 = vmatpush1.msra.mxu0 %v78
    %210 = vmatprep.subr.mxu0 0.0
    %211 = vmatpush1.msra.mxu0 %v79
    %212 = vmatprep.subr.mxu0 0.0
    %213 = vmatpush1.msra.mxu0 %v80
    %214 = vmatprep.subr.mxu0 0.0
    %215 = vmatpush1.msra.mxu0 %v81
    %216 = vmatprep.subr.mxu0 0.0
    %217 = vmatpush1.msra.mxu0 %v82
    %218 = vmatprep.subr.mxu0 0.0
    %219 = vmatpush1.msra.mxu0 %v83
    %220 = vmatprep.subr.mxu0 0.0
    %221 = vmatpush1.msra.mxu0 %v84
    %222 = vmatprep.subr.mxu0 0.0
    %223 = vmatpush1.msra.mxu0 %v85
    %224 = vmatprep.subr.mxu0 0.0
    %225 = vmatpush1.msra.mxu0 %v86
    %226 = vmatprep.subr.mxu0 0.0
    %227 = vmatpush1.msra.mxu0 %v87
    %228 = vmatprep.subr.mxu0 0.0
    %229 = vmatpush1.msra.mxu0 %v88
    %230 = vmatprep.mubr.f32.mxu0 %v24
    %231 = vmatmul.mubr.f32.gmra.mrb[0].mxu0 %v23
    %v232 = vpop.f32.mrb[0].mxu0
    %v233 = vadd.f32 %v163, %v232
    %v234 = vpop.f32.mrb[0].mxu0
    %235 = vdwg.mxu0
    %v236 = vmax.f32 %v233, 0.0
    %v237 = vld [vmem:[%s3] sm:$0xff]
    %v238 = vld [vmem:[%s3 + $0x8] sm:$0xff]
    %v239 = vld [vmem:[%s4] sm:$0x1]
    %v241 = vlaneseq
    %v242 = vshrl.u32 %v241, 7
    %v243 = vsub.s32 0, %v242
    %v244 = vrot.slane %v239, %v243
    %vm246 = vcmask 130048
    %v248 = vsel %vm246, %v236, 0
    %250 = vmatprep.subr.mxu0 0.0
    %251 = vmatpush1.msra.mxu0 %v237
    %252 = vmatprep.subr.mxu0 0.0
    %253 = vmatpush1.msra.mxu0 %v238
    %254 = vmatprep.subr.mxu0 0.0
    %255 = vmatpush1.msra.mxu0 0.0
    %256 = vmatprep.subr.mxu0 0.0
    %257 = vmatpush1.msra.mxu0 0.0
    %258 = vmatprep.subr.mxu0 0.0
    %259 = vmatpush1.msra.mxu0 0.0
    %260 = vmatprep.subr.mxu0 0.0
    %261 = vmatpush1.msra.mxu0 0.0
    %262 = vmatprep.subr.mxu0 0.0
    %263 = vmatpush1.msra.mxu0 0.0
    %264 = vmatprep.subr.mxu0 0.0
    %265 = vmatpush1.msra.mxu0 0.0
    %266 = vmatprep.subr.mxu0 0.0
    %267 = vmatpush1.msra.mxu0 0.0
    %268 = vmatprep.subr.mxu0 0.0
    %269 = vmatpush1.msra.mxu0 0.0
    %270 = vmatprep.subr.mxu0 0.0
    %271 = vmatpush1.msra.mxu0 0.0
    %272 = vmatprep.subr.mxu0 0.0
    %273 = vmatpush1.msra.mxu0 0.0
    %274 = vmatprep.subr.mxu0 0.0
    %275 = vmatpush1.msra.mxu0 0.0
    %276 = vmatprep.subr.mxu0 0.0
    %277 = vmatpush1.msra.mxu0 0.0
    %278 = vmatprep.subr.mxu0 0.0
    %279 = vmatpush1.msra.mxu0 0.0
    %280 = vmatprep.subr.mxu0 0.0
    %281 = vmatpush1.msra.mxu0 0.0
    %282 = vmatprep.subr.mxu0 0.0
    %283 = vmatpush1.msra.mxu0 0.0
    %284 = vmatprep.subr.mxu0 0.0
    %285 = vmatpush1.msra.mxu0 0.0
    %286 = vmatprep.subr.mxu0 0.0
    %287 = vmatpush1.msra.mxu0 0.0
    %288 = vmatprep.subr.mxu0 0.0
    %289 = vmatpush1.msra.mxu0 0.0
    %290 = vmatprep.subr.mxu0 0.0
    %291 = vmatpush1.msra.mxu0 0.0
    %292 = vmatprep.subr.mxu0 0.0
    %293 = vmatpush1.msra.mxu0 0.0
    %294 = vmatprep.subr.mxu0 0.0
    %295 = vmatpush1.msra.mxu0 0.0
    %296 = vmatprep.subr.mxu0 0.0
    %297 = vmatpush1.msra.mxu0 0.0
    %298 = vmatprep.subr.mxu0 0.0
    %299 = vmatpush1.msra.mxu0 0.0
    %300 = vmatprep.subr.mxu0 0.0
    %301 = vmatpush1.msra.mxu0 0.0
    %302 = vmatprep.subr.mxu0 0.0
    %303 = vmatpush1.msra.mxu0 0.0
    %304 = vmatprep.subr.mxu0 0.0
    %305 = vmatpush1.msra.mxu0 0.0
    %306 = vmatprep.subr.mxu0 0.0
    %307 = vmatpush1.msra.mxu0 0.0
    %308 = vmatprep.subr.mxu0 0.0
    %309 = vmatpush1.msra.mxu0 0.0
    %310 = vmatprep.subr.mxu0 0.0
    %311 = vmatpush1.msra.mxu0 0.0
    %312 = vmatprep.subr.mxu0 0.0
    %313 = vmatpush1.msra.mxu0 0.0
    %314 = vmatprep.mubr.f32.mxu0 0.0
    %315 = vmatmul.mubr.f32.gmra.mrb[0].mxu0 %v248
    %v316 = vpop.f32.mrb[0].mxu0
    %v317 = vadd.f32 %v244, %v316
    %v318 = vpop.f32.mrb[0].mxu0
    %319 = vdwg.mxu0
    %320 = vst [vmem:[#allocation2] sm:$0xff] %v317
    // Predicated region
    $region22: #{tpu_custom_call.1} parent=1 // pred_check
      _
    $region23: #{tpu_custom_call.1} parent=1 // pred_check_branch
      %322 = sbr.rel (0) target = $region25
    $region24: #{tpu_custom_call.1} parent=1 // pred_region
      %s324 = ssub.s32 128, 128
      %325 = vsyncadd [#allocation3], %s324
      %s327 = sshll.u32 [#allocation2], 4
      %s328 = int_to_ptr.vmem [resolvable:$true] %s327
      %330 = dma.vmem_to_hbm [thread:$0]  %s328, 128, %s5, [#allocation3]
    $region25: #{tpu_custom_call.1} parent=1 // pred_fallthru
      _
    // Predicated region
    $region26: #{tpu_custom_call.1} parent=1 // pred_check
      _
    $region27: #{tpu_custom_call.1} parent=1 // pred_check_branch
      %332 = sbr.rel (0) target = $region29
    $region28: #{tpu_custom_call.1} parent=1 // pred_region
      %333 = dma.done [#allocation3], 128
    $region29: #{tpu_custom_call.1} parent=1 // pred_fallthru
      _
    %334 = vsyncpa [#allocation3], 1

</llo_original>
